<compile_context>
chip_gen: v5e
topology: v5e:2x2
jax: 0.10.0
libtpu: 0.0.40
codegen_flags: <defaults>
</compile_context>

<pallas_src>
import jax
import jax.numpy as jnp
from jax.experimental import pallas as pl
from jax.experimental.pallas import tpu as pltpu

FIRST_LAYER = 400
SECOND_LAYER = 200
F_PAD = 512          # FIRST_LAYER (+ action pass-through) padded to a multiple of 128
S_PAD = 256          # SECOND_LAYER padded to a multiple of 128
MAX_TILE_B = 2048    # batch tile cap (per-tile activations ~5 KiB/row -> ~10 MiB in VMEM)


def _round_up(x, m):
    return (x + m - 1) // m * m


def _critic_kernel(x_ref, w1_ref, b1_ref, floor_ref, w2_ref, b2_ref, w3_ref,
                   b3_ref, out_ref):
    # Layer 1 (and action pass-through via identity rows of W1_ext): one bf16 MXU matmul,
    # f32 accumulation.  max(., floor) is exact ReLU on the real l1 columns (floor = 0)
    # and identity on the action columns (floor = -f32max); padding columns stay 0.
    h = jnp.dot(x_ref[...], w1_ref[...], preferred_element_type=jnp.float32)
    x2 = jnp.maximum(h + b1_ref[...], floor_ref[...])

    # Layer 2: [relu(l1) | action | 0] @ packed W2 (W2a rows 0..399, W2b rows 400..401,
    # zero rows above) on the MXU, then bias + ReLU on the VPU.
    l2 = jnp.dot(x2.astype(jnp.bfloat16), w2_ref[...],
                 preferred_element_type=jnp.float32)
    l2 = jnp.maximum(l2 + b2_ref[...], 0.0)

    # Output layer (200 -> 1): VPU multiply + cross-lane reduce, lane-dense row write.
    q = jnp.sum(l2 * w3_ref[...], axis=-1) + b3_ref[0, 0]
    out_ref[...] = q[None, None, :]


def ddpg_critic_forward(state, action, kernel_params, tile_b=None):
    """state: (B, dim_state) f32, action: (B, n_actions) f32 -> (B, 1) f32."""
    B, dim_state = state.shape
    n_actions = action.shape[1]
    w1e, b1, floor, w2, b2, w3, b3 = kernel_params
    d_in = dim_state + n_actions

    # Single lane-dense bf16 activation input; the torch.cat with l1 happens inside the
    # layer-1 matmul via the identity block of W1_ext.
    x_in = jnp.concatenate([state, action], axis=1).astype(jnp.bfloat16)

    if tile_b is None:
        if B <= 128:
            tile_b = _round_up(max(B, 8), 8)                 # one small tile
        else:
            # >= 2 grid steps (v7x megacore), 128-aligned tiles, capped by MAX_TILE_B.
            tile_b = min(MAX_TILE_B, _round_up(pl.cdiv(B, 2), 128))
    num_tiles = pl.cdiv(B, tile_b)
    # Ragged last tile is handled by Pallas edge-block padding; garbage rows are never
    # reduced across the batch and are sliced off below (no wrapper-side jnp.pad).

    out = pl.pallas_call(
        _critic_kernel,
        out_shape=jax.ShapeDtypeStruct((num_tiles, 1, tile_b), jnp.float32),
        grid=(num_tiles,),
        in_specs=[
            pl.BlockSpec((tile_b, d_in), lambda i: (i, 0)),       # [state|action] tile, bf16
            pl.BlockSpec((d_in, F_PAD), lambda i: (0, 0)),        # W1_ext (bf16), resident
            pl.BlockSpec((1, F_PAD), lambda i: (0, 0)),           # b1 (f32)
            pl.BlockSpec((1, F_PAD), lambda i: (0, 0)),           # ReLU floor row (f32)
            pl.BlockSpec((F_PAD, S_PAD), lambda i: (0, 0)),       # packed W2 (bf16), resident
            pl.BlockSpec((1, S_PAD), lambda i: (0, 0)),           # b2 (f32)
            pl.BlockSpec((1, S_PAD), lambda i: (0, 0)),           # W3 row (f32, VPU)
            pl.BlockSpec((1, 1), lambda i: (0, 0),
                         memory_space=pltpu.MemorySpace.SMEM),    # b3 scalar
        ],
        out_specs=pl.BlockSpec((1, 1, tile_b), lambda i: (i, 0, 0)),  # lane-dense row
        compiler_params=pltpu.CompilerParams(
            dimension_semantics=("parallel",),                   # shard tiles across TCs
            vmem_limit_bytes=48 * 1024 * 1024),                  # > v5e 16 MiB default
    )(x_in, w1e, b1, floor, w2, b2, w3, b3)

    return out.reshape(num_tiles * tile_b, 1)[:B]


def init_params(key, dim_state, n_actions):
    """PyTorch-style Linear init U(-1/sqrt(fan_in), 1/sqrt(fan_in)), logical sizes."""
    ks = jax.random.split(key, 6)

    def unif(k, shape, fan_in):
        bound = 1.0 / jnp.sqrt(jnp.float32(fan_in))
        return jax.random.uniform(k, shape, jnp.float32, -bound, bound)

    in2 = FIRST_LAYER + n_actions
    w1 = unif(ks[0], (dim_state, FIRST_LAYER), dim_state)          # (Ds, 400)
    b1 = unif(ks[1], (1, FIRST_LAYER), dim_state)                  # (1, 400)
    w2 = unif(ks[2], (in2, SECOND_LAYER), in2)                     # (402, 200)
    b2 = unif(ks[3], (1, SECOND_LAYER), in2)                       # (1, 200)
    w3 = unif(ks[4], (SECOND_LAYER, 1), SECOND_LAYER)              # (200, 1)
    b3 = unif(ks[5], (1, 1), SECOND_LAYER)                         # (1, 1)

    w2a = w2[:FIRST_LAYER, :]      # acts on l1      (400, 200)
    w2b = w2[FIRST_LAYER:, :]      # acts on action  (n_actions, 200)
    return (w1, b1, w2a, w2b, b2, w3, b3)


def pack_kernel_params(params):
    """Zero-pad hidden dims to multiples of 128, fold the action path into W1/W2, and
    cast MXU weights to bf16 (math on the logical entries is exactly equivalent)."""
    w1, b1, w2a, w2b, b2, w3, b3 = params
    ds = w1.shape[0]
    na = w2b.shape[0]

    # Extended layer-1 weight: [state | action] -> [l1 | action | zeros].
    w1e = jnp.zeros((ds + na, F_PAD), jnp.float32)
    w1e = w1e.at[:ds, :FIRST_LAYER].set(w1)
    w1e = w1e.at[ds:, FIRST_LAYER:FIRST_LAYER + na].set(jnp.eye(na, dtype=jnp.float32))

    b1p = jnp.zeros((1, F_PAD), jnp.float32).at[:, :FIRST_LAYER].set(b1)
    # ReLU floor: 0 on real l1 / padding columns, -f32max on action columns (pass-through).
    floor = jnp.zeros((1, F_PAD), jnp.float32).at[
        :, FIRST_LAYER:FIRST_LAYER + na].set(jnp.finfo(jnp.float32).min)

    # Packed layer-2 weight: W2a in rows 0..399, W2b in rows 400..400+na-1, zeros above.
    w2p = jnp.zeros((F_PAD, S_PAD), jnp.float32)
    w2p = w2p.at[:FIRST_LAYER, :SECOND_LAYER].set(w2a)
    w2p = w2p.at[FIRST_LAYER:FIRST_LAYER + na, :SECOND_LAYER].set(w2b)

    b2p = jnp.zeros((1, S_PAD), jnp.float32).at[:, :SECOND_LAYER].set(b2)
    w3p = jnp.zeros((1, S_PAD), jnp.float32).at[:, :SECOND_LAYER].set(w3[:, 0][None, :])
    return (w1e.astype(jnp.bfloat16), b1p, floor,
            w2p.astype(jnp.bfloat16), b2p, w3p, b3)


def reference_forward(state, action, params):
    """Plain-JAX f32 reference matching the PyTorch forward exactly."""
    w1, b1, w2a, w2b, b2, w3, b3 = params
    l1 = jnp.maximum(state @ w1 + b1, 0.0)
    cat = jnp.concatenate([l1, action], axis=1)
    w2 = jnp.concatenate([w2a, w2b], axis=0)
    l2 = jnp.maximum(cat @ w2 + b2, 0.0)
    return l2 @ w3 + b3


if __name__ == "__main__":
    dim_state = 8      # e.g. LunarLanderContinuous state dim
    n_actions = 2

    key = jax.random.PRNGKey(0)
    kp, ks, ka = jax.random.split(key, 3)

    params = init_params(kp, dim_state, n_actions)
    kparams = pack_kernel_params(params)

    # Small single-tile check.
    batch = 8
    state = jax.random.normal(ks, (batch, dim_state), jnp.float32)
    action = jax.random.uniform(ka, (batch, n_actions), jnp.float32, -1.0, 1.0)
    out = jax.block_until_ready(ddpg_critic_forward(state, action, kparams))
    ref = reference_forward(state, action, params)
    assert out.shape == (batch, 1)
    # bf16 MXU inputs (f32 accumulation) -> loosened tolerance vs the f32 reference.
    assert jnp.allclose(out, ref, atol=2e-2, rtol=2e-2), \
        f"mismatch, max|diff|={float(jnp.max(jnp.abs(out - ref)))}"

    # Multi-tile + ragged-edge check (2 parallel grid steps, 300 % 256 != 0).
    batch2 = 300
    ks2, ka2 = jax.random.split(jax.random.PRNGKey(1))
    state2 = jax.random.normal(ks2, (batch2, dim_state), jnp.float32)
    action2 = jax.random.uniform(ka2, (batch2, n_actions), jnp.float32, -1.0, 1.0)
    out2 = jax.block_until_ready(ddpg_critic_forward(state2, action2, kparams))
    ref2 = reference_forward(state2, action2, params)
    assert out2.shape == (batch2, 1)
    assert jnp.allclose(out2, ref2, atol=2e-2, rtol=2e-2), \
        f"mismatch (ragged), max|diff|={float(jnp.max(jnp.abs(out2 - ref2)))}"

    print("KERNEL_OK")
</pallas_src>

<mosaic_0001>
module attributes {stable_mosaic.version = 11 : i64} {
  func.func @_critic_kernel(%arg0: i32, %arg1: memref<8x10xbf16, #tpu.memory_space<vmem>>, %arg2: memref<10x512xbf16, #tpu.memory_space<vmem>>, %arg3: memref<1x512xf32, #tpu.memory_space<vmem>>, %arg4: memref<1x512xf32, #tpu.memory_space<vmem>>, %arg5: memref<512x256xbf16, #tpu.memory_space<vmem>>, %arg6: memref<1x256xf32, #tpu.memory_space<vmem>>, %arg7: memref<1x256xf32, #tpu.memory_space<vmem>>, %arg8: memref<1x1xf32, #tpu.memory_space<smem>>, %arg9: memref<1x1x8xf32, #tpu.memory_space<vmem>>) attributes {dimension_semantics = [#tpu.dimension_semantics<parallel>], iteration_bounds = array<i64: 1>, scalar_prefetch = 0 : i64, scratch_operands = 0 : i64, tpu.core_type = #tpu.core_type<tc>, window_params = [{transform_indices = @transform_0, window_bounds = array<i64: 8, 10>}, {pipeline_mode = #tpu.pipeline_mode<synchronous>, transform_indices = @transform_1, window_bounds = array<i64: 10, 512>}, {pipeline_mode = #tpu.pipeline_mode<synchronous>, transform_indices = @transform_2, window_bounds = array<i64: 1, 512>}, {pipeline_mode = #tpu.pipeline_mode<synchronous>, transform_indices = @transform_3, window_bounds = array<i64: 1, 512>}, {pipeline_mode = #tpu.pipeline_mode<synchronous>, transform_indices = @transform_4, window_bounds = array<i64: 512, 256>}, {pipeline_mode = #tpu.pipeline_mode<synchronous>, transform_indices = @transform_5, window_bounds = array<i64: 1, 256>}, {pipeline_mode = #tpu.pipeline_mode<synchronous>, transform_indices = @transform_6, window_bounds = array<i64: 1, 256>}, {transform_indices = @transform_7, window_bounds = array<i64: 1, 1>}, {transform_indices = @transform_8, window_bounds = array<i64: 1, 1, 8>}]} {
    %c0 = arith.constant 0 : index
    %c0_0 = arith.constant 0 : index
    %0 = vector.load %arg1[%c0, %c0_0] : memref<8x10xbf16, #tpu.memory_space<vmem>>, vector<8x10xbf16>
    %c0_1 = arith.constant 0 : index
    %c0_2 = arith.constant 0 : index
    %1 = vector.load %arg2[%c0_1, %c0_2] : memref<10x512xbf16, #tpu.memory_space<vmem>>, vector<10x512xbf16>
    %cst = arith.constant dense<0.000000e+00> : vector<8x512xf32>
    %2 = tpu.matmul %0, %1, %cst {dimension_numbers = #tpu.dot_dimension_numbers<[1], [0], [0], [1], [0, 0, 1, 1], [], []>} : vector<8x10xbf16>, vector<10x512xbf16>, vector<8x512xf32> -> vector<8x512xf32>
    %c0_3 = arith.constant 0 : index
    %c0_4 = arith.constant 0 : index
    %3 = vector.load %arg3[%c0_3, %c0_4] : memref<1x512xf32, #tpu.memory_space<vmem>>, vector<1x512xf32>
    %4 = vector.broadcast %3 : vector<1x512xf32> to vector<8x512xf32>
    %5 = arith.addf %2, %4 : vector<8x512xf32>
    %c0_5 = arith.constant 0 : index
    %c0_6 = arith.constant 0 : index
    %6 = vector.load %arg4[%c0_5, %c0_6] : memref<1x512xf32, #tpu.memory_space<vmem>>, vector<1x512xf32>
    %7 = vector.broadcast %6 : vector<1x512xf32> to vector<8x512xf32>
    %8 = arith.maximumf %5, %7 : vector<8x512xf32>
    %9 = arith.truncf %8 : vector<8x512xf32> to vector<8x512xbf16>
    %c0_7 = arith.constant 0 : index
    %c0_8 = arith.constant 0 : index
    %10 = vector.load %arg5[%c0_7, %c0_8] : memref<512x256xbf16, #tpu.memory_space<vmem>>, vector<512x256xbf16>
    %cst_9 = arith.constant dense<0.000000e+00> : vector<8x256xf32>
    %11 = tpu.matmul %9, %10, %cst_9 {dimension_numbers = #tpu.dot_dimension_numbers<[1], [0], [0], [1], [0, 0, 1, 1], [], []>} : vector<8x512xbf16>, vector<512x256xbf16>, vector<8x256xf32> -> vector<8x256xf32>
    %c0_10 = arith.constant 0 : index
    %c0_11 = arith.constant 0 : index
    %12 = vector.load %arg6[%c0_10, %c0_11] : memref<1x256xf32, #tpu.memory_space<vmem>>, vector<1x256xf32>
    %13 = vector.broadcast %12 : vector<1x256xf32> to vector<8x256xf32>
    %14 = arith.addf %11, %13 : vector<8x256xf32>
    %cst_12 = arith.constant 0.000000e+00 : f32
    %15 = vector.broadcast %cst_12 : f32 to vector<8x256xf32>
    %16 = arith.maximumf %14, %15 : vector<8x256xf32>
    %c0_13 = arith.constant 0 : index
    %c0_14 = arith.constant 0 : index
    %17 = vector.load %arg7[%c0_13, %c0_14] : memref<1x256xf32, #tpu.memory_space<vmem>>, vector<1x256xf32>
    %18 = vector.broadcast %17 : vector<1x256xf32> to vector<8x256xf32>
    %19 = arith.mulf %16, %18 : vector<8x256xf32>
    %cst_15 = arith.constant dense<0.000000e+00> : vector<8xf32>
    %20 = vector.multi_reduction <add>, %19, %cst_15 [1] : vector<8x256xf32> to vector<8xf32>
    %c0_16 = arith.constant 0 : index
    %c0_17 = arith.constant 0 : index
    %21 = memref.load %arg8[%c0_16, %c0_17] : memref<1x1xf32, #tpu.memory_space<smem>>
    %22 = vector.broadcast %21 : f32 to vector<8xf32>
    %23 = arith.addf %20, %22 : vector<8xf32>
    %24 = vector.shape_cast %23 : vector<8xf32> to vector<1x1x8xf32>
    %c0_18 = arith.constant 0 : index
    %c0_19 = arith.constant 0 : index
    %c0_20 = arith.constant 0 : index
    %25 = vector.load %arg9[%c0_18, %c0_19, %c0_20] : memref<1x1x8xf32, #tpu.memory_space<vmem>>, vector<1x1x8xf32>
    tpu.vector_store %arg9[%c0_18, %c0_19, %c0_20], %24 {strides = array<i32>} : memref<1x1x8xf32, #tpu.memory_space<vmem>>, vector<1x1x8xf32>,
    return
  }
  func.func @transform_0(%arg0: i32) -> (i32, i32) {
    %c0_i32 = arith.constant 0 : i32
    %c0_i32_0 = arith.constant 0 : i32
    return %arg0, %c0_i32 : i32, i32
  }
  func.func @transform_1(%arg0: i32) -> (i32, i32) {
    %c0_i32 = arith.constant 0 : i32
    %c0_i32_0 = arith.constant 0 : i32
    %c0_i32_1 = arith.constant 0 : i32
    return %c0_i32, %c0_i32_0 : i32, i32
  }
  func.func @transform_2(%arg0: i32) -> (i32, i32) {
    %c0_i32 = arith.constant 0 : i32
    %c0_i32_0 = arith.constant 0 : i32
    %c0_i32_1 = arith.constant 0 : i32
    return %c0_i32, %c0_i32_0 : i32, i32
  }
  func.func @transform_3(%arg0: i32) -> (i32, i32) {
    %c0_i32 = arith.constant 0 : i32
    %c0_i32_0 = arith.constant 0 : i32
    %c0_i32_1 = arith.constant 0 : i32
    return %c0_i32, %c0_i32_0 : i32, i32
  }
  func.func @transform_4(%arg0: i32) -> (i32, i32) {
    %c0_i32 = arith.constant 0 : i32
    %c0_i32_0 = arith.constant 0 : i32
    %c0_i32_1 = arith.constant 0 : i32
    return %c0_i32, %c0_i32_0 : i32, i32
  }
  func.func @transform_5(%arg0: i32) -> (i32, i32) {
    %c0_i32 = arith.constant 0 : i32
    %c0_i32_0 = arith.constant 0 : i32
    %c0_i32_1 = arith.constant 0 : i32
    return %c0_i32, %c0_i32_0 : i32, i32
  }
  func.func @transform_6(%arg0: i32) -> (i32, i32) {
    %c0_i32 = arith.constant 0 : i32
    %c0_i32_0 = arith.constant 0 : i32
    %c0_i32_1 = arith.constant 0 : i32
    return %c0_i32, %c0_i32_0 : i32, i32
  }
  func.func @transform_7(%arg0: i32) -> (i32, i32) {
    %c0_i32 = arith.constant 0 : i32
    %c0_i32_0 = arith.constant 0 : i32
    %c0_i32_1 = arith.constant 0 : i32
    return %c0_i32, %c0_i32_0 : i32, i32
  }
  func.func @transform_8(%arg0: i32) -> (i32, i32, i32) {
    %c0_i32 = arith.constant 0 : i32
    %c0_i32_0 = arith.constant 0 : i32
    %c0_i32_1 = arith.constant 0 : i32
    return %arg0, %c0_i32, %c0_i32_0 : i32, i32, i32
  }
}

</mosaic_0001>

<llo_original>
// kernel: tpu_custom_call.1
$region0: #{tpu_custom_call.1}
  #allocation0 [shape = 'u32[]', space=smem, size = 0x4, offset = 0x4, fixed_abs, tag = 'smem constant byte address 0x4 - core index']
  #allocation1 [shape = 'u32[72,128]{1,0:T(1,128)}', space=vmem, size = 0x9000, scoped, tag = 'internal scratch']
  #allocation2 [shape = 'f32[1,1]{1,0:T(1,128)S(6)}', space=smem, size = 0x200, scoped, tag = 'scoped memory for tpu_custom_call.1']
  %s0 = inlined_call_operand.hbm [shape: bf16[8,10], index: 0, kind: input, shape index: {}]
  %s1 = inlined_call_operand.hbm [shape: bf16[10,512], index: 1, kind: input, shape index: {}]
  %s2 = inlined_call_operand.hbm [shape: f32[1,512], index: 2, kind: input, shape index: {}]
  %s3 = inlined_call_operand.vmem [shape: f32[1,512], index: 3, kind: input, shape index: {}]
  %s4 = inlined_call_operand.hbm [shape: bf16[512,256], index: 4, kind: input, shape index: {}]
  %s5 = inlined_call_operand.vmem [shape: f32[1,256], index: 5, kind: input, shape index: {}]
  %s6 = inlined_call_operand.hbm [shape: f32[1,256], index: 6, kind: input, shape index: {}]
  %s7 = inlined_call_operand.<no memory space> [shape: f32[1,1], index: 7, kind: input, shape index: {}]
  %s8 = inlined_call_operand.hbm [shape: f32[1,1,8], index: 8, kind: output, shape index: {}]
  %s9 = sld [smem:[#allocation0]]
  $region62: #{tpu_custom_call.1} parent=0
    _
  %s11 = ssub.s32 1, %s9
  %s12 = scalar_select 0, %s11, %s9
  %13 = sst [smem:[#allocation2]] %s7
  $region1: #{tpu_custom_call.1} parent=0
    #allocation3 [shape = 'u8[2048]{0}', space=vmem, size = 0x800, scoped, tag = 'input window, operand 0, single buffered']
    #allocation4 [shape = 's32[1]{0}', space=sflag, size = 0x4, scoped, tag = 'scoped memory for tpu_custom_call.1']
    #allocation5 [shape = 's32[1]{0}', space=sflag, size = 0x4, scoped, tag = 'scoped memory for tpu_custom_call.1']
    #allocation6 [shape = 'u8[16384]{0}', space=vmem, size = 0x4000, scoped, tag = 'input window, operand 1, single buffered']
    #allocation7 [shape = 's32[1]{0}', space=sflag, size = 0x4, scoped, tag = 'scoped memory for tpu_custom_call.1']
    #allocation8 [shape = 'u8[2048]{0}', space=vmem, size = 0x800, scoped, tag = 'input window, operand 2, single buffered']
    #allocation9 [shape = 'u8[262144]{0}', space=vmem, size = 0x40000, scoped, tag = 'input window, operand 4, single buffered']
    #allocation10 [shape = 's32[1]{0}', space=sflag, size = 0x4, scoped, tag = 'scoped memory for tpu_custom_call.1']
    #allocation11 [shape = 'u8[1024]{0}', space=vmem, size = 0x400, scoped, tag = 'input window, operand 6, single buffered']
    #allocation12 [shape = 'u8[512]{0}', space=vmem, size = 0x400, scoped, tag = 'output window, operand 0, single buffered']
    %14 = vsyncpa [#allocation4], 0
    %15 = vsyncpa [#allocation7], 0
    %16 = vsyncpa [#allocation10], 0
    %17 = vsyncpa [#allocation5], 0
    // Predicated region
    $region2: #{tpu_custom_call.1} parent=1 // pred_check
      _
    $region3: #{tpu_custom_call.1} parent=1 // pred_check_branch
      %19 = sbr.rel (0) target = $region5
    $region4: #{tpu_custom_call.1} parent=1 // pred_region
      %21 = vsyncadd [#allocation4], 0
      %s23 = sshll.u32 %s0, 4
      %s24 = int_to_ptr.hbm [resolvable:$true] %s23
      %s25 = sshll.u32 [#allocation3], 4
      %s26 = int_to_ptr.vmem [resolvable:$true] %s25
      %28 = dma.hbm_to_vmem [thread:$0]  %s24, 64, %s26, [#allocation4]
    $region5: #{tpu_custom_call.1} parent=1 // pred_fallthru
      _
    // Predicated region
    $region6: #{tpu_custom_call.1} parent=1 // pred_check
      _
    $region7: #{tpu_custom_call.1} parent=1 // pred_check_branch
      %30 = sbr.rel (0) target = $region9
    $region8: #{tpu_custom_call.1} parent=1 // pred_region
      %32 = vsyncadd [#allocation7], 0
      %s33 = sshll.u32 %s1, 4
      %s34 = int_to_ptr.hbm [resolvable:$true] %s33
      %s35 = sshll.u32 [#allocation6], 4
      %s36 = int_to_ptr.vmem [resolvable:$true] %s35
      %41 = dma.hbm_to_vmem [thread:$0]  %s34, 512, %s36, [#allocation7], 256, 256, 16
    $region9: #{tpu_custom_call.1} parent=1 // pred_fallthru
      _
    // Predicated region
    $region10: #{tpu_custom_call.1} parent=1 // pred_check
      _
    $region11: #{tpu_custom_call.1} parent=1 // pred_check_branch
      %43 = sbr.rel (0) target = $region13
    $region12: #{tpu_custom_call.1} parent=1 // pred_region
      %45 = vsyncadd [#allocation7], 0
      %s47 = sshll.u32 %s2, 4
      %s48 = int_to_ptr.hbm [resolvable:$true] %s47
      %s49 = sshll.u32 [#allocation8], 4
      %s50 = int_to_ptr.vmem [resolvable:$true] %s49
      %52 = dma.hbm_to_vmem [thread:$0]  %s48, 64, %s50, [#allocation7]
    $region13: #{tpu_custom_call.1} parent=1 // pred_fallthru
      _
    // Predicated region
    $region14: #{tpu_custom_call.1} parent=1 // pred_check
      _
    $region15: #{tpu_custom_call.1} parent=1 // pred_check_branch
      %54 = sbr.rel (0) target = $region17
    $region16: #{tpu_custom_call.1} parent=1 // pred_region
      _
    $region17: #{tpu_custom_call.1} parent=1 // pred_fallthru
      _
    // Predicated region
    $region18: #{tpu_custom_call.1} parent=1 // pred_check
      _
    $region19: #{tpu_custom_call.1} parent=1 // pred_check_branch
      %56 = sbr.rel (0) target = $region21
    $region20: #{tpu_custom_call.1} parent=1 // pred_region
      %58 = vsyncadd [#allocation10], 0
      %s59 = sshll.u32 %s4, 4
      %s60 = int_to_ptr.hbm [resolvable:$true] %s59
      %s61 = sshll.u32 [#allocation9], 4
      %s62 = int_to_ptr.vmem [resolvable:$true] %s61
      %67 = dma.hbm_to_vmem [thread:$0]  %s60, 8192, %s62, [#allocation10], 128, 128, 8
    $region21: #{tpu_custom_call.1} parent=1 // pred_fallthru
      _
    // Predicated region
    $region22: #{tpu_custom_call.1} parent=1 // pred_check
      _
    $region23: #{tpu_custom_call.1} parent=1 // pred_check_branch
      %69 = sbr.rel (0) target = $region25
    $region24: #{tpu_custom_call.1} parent=1 // pred_region
      _
    $region25: #{tpu_custom_call.1} parent=1 // pred_fallthru
      _
    // Predicated region
    $region26: #{tpu_custom_call.1} parent=1 // pred_check
      _
    $region27: #{tpu_custom_call.1} parent=1 // pred_check_branch
      %71 = sbr.rel (0) target = $region29
    $region28: #{tpu_custom_call.1} parent=1 // pred_region
      %73 = vsyncadd [#allocation10], 0
      %s75 = sshll.u32 %s6, 4
      %s76 = int_to_ptr.hbm [resolvable:$true] %s75
      %s77 = sshll.u32 [#allocation11], 4
      %s78 = int_to_ptr.vmem [resolvable:$true] %s77
      %80 = dma.hbm_to_vmem [thread:$0]  %s76, 32, %s78, [#allocation10]
    $region29: #{tpu_custom_call.1} parent=1 // pred_fallthru
      _
    // Predicated region
    $region30: #{tpu_custom_call.1} parent=1 // pred_check
      _
    $region31: #{tpu_custom_call.1} parent=1 // pred_check_branch
      %82 = sbr.rel (0) target = $region33
    $region32: #{tpu_custom_call.1} parent=1 // pred_region
      _
    $region33: #{tpu_custom_call.1} parent=1 // pred_fallthru
      _
    // Predicated region
    $region34: #{tpu_custom_call.1} parent=1 // pred_check
      _
    $region35: #{tpu_custom_call.1} parent=1 // pred_check_branch
      %84 = sbr.rel (0) target = $region37
    $region36: #{tpu_custom_call.1} parent=1 // pred_region
      %86 = dma.done [#allocation4], 64
    $region37: #{tpu_custom_call.1} parent=1 // pred_fallthru
      _
    // Predicated region
    $region38: #{tpu_custom_call.1} parent=1 // pred_check
      _
    $region39: #{tpu_custom_call.1} parent=1 // pred_check_branch
      %88 = sbr.rel (0) target = $region41
    $region40: #{tpu_custom_call.1} parent=1 // pred_region
      %90 = dma.done [#allocation7], 512
    $region41: #{tpu_custom_call.1} parent=1 // pred_fallthru
      _
    // Predicated region
    $region42: #{tpu_custom_call.1} parent=1 // pred_check
      _
    $region43: #{tpu_custom_call.1} parent=1 // pred_check_branch
      %92 = sbr.rel (0) target = $region45
    $region44: #{tpu_custom_call.1} parent=1 // pred_region
      %94 = dma.done [#allocation7], 64
    $region45: #{tpu_custom_call.1} parent=1 // pred_fallthru
      _
    // Predicated region
    $region46: #{tpu_custom_call.1} parent=1 // pred_check
      _
    $region47: #{tpu_custom_call.1} parent=1 // pred_check_branch
      %96 = sbr.rel (0) target = $region49
    $region48: #{tpu_custom_call.1} parent=1 // pred_region
      %98 = dma.done [#allocation10], 8192
    $region49: #{tpu_custom_call.1} parent=1 // pred_fallthru
      _
    // Predicated region
    $region50: #{tpu_custom_call.1} parent=1 // pred_check
      _
    $region51: #{tpu_custom_call.1} parent=1 // pred_check_branch
      %100 = sbr.rel (0) target = $region53
    $region52: #{tpu_custom_call.1} parent=1 // pred_region
      %102 = dma.done [#allocation10], 32
    $region53: #{tpu_custom_call.1} parent=1 // pred_fallthru
      _
    %v104 = vld [vmem:[#allocation3] sm:$0xf]
    %v105 = vld [vmem:[#allocation6] sm:$0xff]
    %v106 = vld [vmem:[#allocation6 + $0x8] sm:$0xff]
    %v107 = vld [vmem:[#allocation6 + $0x10] sm:$0x11]
    %v108 = vld [vmem:[#allocation6 + $0x18] sm:$0x11]
    %v109 = vld [vmem:[#allocation8] sm:$0xf]
    %v111 = vperm.slane %v109, 0
    %v112 = vperm.slane %v109, 1
    %v113 = vperm.slane %v109, 2
    %v114 = vperm.slane %v109, 3
    %v123 = vunpack.c.l.b16 %v105
    %v124 = vunpack.c.h.b16 %v105
    %v125 = vunpack.c.l.b16 %v106
    %v126 = vunpack.c.h.b16 %v106
    %v127 = vunpack.c.l.b16 %v107
    %v128 = vunpack.c.h.b16 %v107
    %v129 = vunpack.c.l.b16 %v108
    %v130 = vunpack.c.h.b16 %v108
    %v131 = vpack.c.b16 %v127, %v123
    %v132 = vpack.c.b16 %v128, %v124
    %v133 = vpack.c.b16 %v129, %v125
    %v134 = vpack.c.b16 %v130, %v126
    %vm135 = vcmask 80896
    %v137 = vsel %vm135, %v104, 0
    %vm139 = vcmask 1044480
    %v141 = vsel %vm139, %v131, 0
    %v144 = vsel %vm139, %v132, 0
    %v147 = vsel %vm139, %v133, 0
    %v150 = vsel %vm139, %v134, 0
    %152 = vmatpush.bf16.msra.mxu0 0
    %153 = vmatpush.bf16.msra.mxu0 0
    %154 = vmatpush.bf16.msra.mxu0 0
    %155 = vmatpush.bf16.msra.mxu0 0
    %156 = vmatpush.bf16.msra.mxu0 0
    %157 = vmatpush.bf16.msra.mxu0 0
    %158 = vmatpush.bf16.msra.mxu0 0
    %159 = vmatpush.bf16.msra.mxu0 %v141
    %160 = vmatmul.bf16.gmra.mxu0 %v137
    %v161 = vpop.f32.mrf.mxu0
    %v162 = vadd.f32 %v111, %v161
    %v163 = vpop.f32.mrf.mxu0
    %164 = vdwg.mxu0
    %165 = vmatpush.bf16.msra.mxu0 0
    %166 = vmatpush.bf16.msra.mxu0 0
    %167 = vmatpush.bf16.msra.mxu0 0
    %168 = vmatpush.bf16.msra.mxu0 0
    %169 = vmatpush.bf16.msra.mxu0 0
    %170 = vmatpush.bf16.msra.mxu0 0
    %171 = vmatpush.bf16.msra.mxu0 0
    %172 = vmatpush.bf16.msra.mxu0 %v144
    %173 = vmatmul.bf16.gmra.mxu0 %v137
    %v174 = vpop.f32.mrf.mxu0
    %v175 = vadd.f32 %v112, %v174
    %v176 = vpop.f32.mrf.mxu0
    %177 = vdwg.mxu0
    %178 = vmatpush.bf16.msra.mxu0 0
    %179 = vmatpush.bf16.msra.mxu0 0
    %180 = vmatpush.bf16.msra.mxu0 0
    %181 = vmatpush.bf16.msra.mxu0 0
    %182 = vmatpush.bf16.msra.mxu0 0
    %183 = vmatpush.bf16.msra.mxu0 0
    %184 = vmatpush.bf16.msra.mxu0 0
    %185 = vmatpush.bf16.msra.mxu0 %v147
    %186 = vmatmul.bf16.gmra.mxu0 %v137
    %v187 = vpop.f32.mrf.mxu0
    %v188 = vadd.f32 %v113, %v187
    %v189 = vpop.f32.mrf.mxu0
    %190 = vdwg.mxu0
    %191 = vmatpush.bf16.msra.mxu0 0
    %192 = vmatpush.bf16.msra.mxu0 0
    %193 = vmatpush.bf16.msra.mxu0 0
    %194 = vmatpush.bf16.msra.mxu0 0
    %195 = vmatpush.bf16.msra.mxu0 0
    %196 = vmatpush.bf16.msra.mxu0 0
    %197 = vmatpush.bf16.msra.mxu0 0
    %198 = vmatpush.bf16.msra.mxu0 %v150
    %199 = vmatmul.bf16.gmra.mxu0 %v137
    %v200 = vpop.f32.mrf.mxu0
    %v201 = vadd.f32 %v114, %v200
    %v202 = vpop.f32.mrf.mxu0
    %203 = vdwg.mxu0
    %v204 = vld [vmem:[%s3] sm:$0xf]
    %v206 = vperm.slane %v204, 0
    %v207 = vperm.slane %v204, 1
    %v208 = vperm.slane %v204, 2
    %v209 = vperm.slane %v204, 3
    %v214 = vmax.f32 %v162, %v206
    %v215 = vmax.f32 %v175, %v207
    %v216 = vmax.f32 %v188, %v208
    %v217 = vmax.f32 %v201, %v209
    %v218 = vpack.c.bf16 %v214, %v214
    %v219 = vpack.c.bf16 %v215, %v215
    %v220 = vpack.c.bf16 %v216, %v216
    %v221 = vpack.c.bf16 %v217, %v217
    %v222 = vld [vmem:[#allocation9] sm:$0xff]
    %v223 = vld [vmem:[#allocation9 + $0x8] sm:$0xff]
    %v224 = vld [vmem:[#allocation9 + $0x10] sm:$0xff]
    %v225 = vld [vmem:[#allocation9 + $0x18] sm:$0xff]
    %v226 = vld [vmem:[#allocation9 + $0x20] sm:$0xff]
    %v227 = vld [vmem:[#allocation9 + $0x28] sm:$0xff]
    %v228 = vld [vmem:[#allocation9 + $0x30] sm:$0xff]
    %v229 = vld [vmem:[#allocation9 + $0x38] sm:$0xff]
    %v230 = vld [vmem:[#allocation9 + $0x40] sm:$0xff]
    %v231 = vld [vmem:[#allocation9 + $0x48] sm:$0xff]
    %v232 = vld [vmem:[#allocation9 + $0x50] sm:$0xff]
    %v233 = vld [vmem:[#allocation9 + $0x58] sm:$0xff]
    %v234 = vld [vmem:[#allocation9 + $0x60] sm:$0xff]
    %v235 = vld [vmem:[#allocation9 + $0x68] sm:$0xff]
    %v236 = vld [vmem:[#allocation9 + $0x70] sm:$0xff]
    %v237 = vld [vmem:[#allocation9 + $0x78] sm:$0xff]
    %v238 = vld [vmem:[#allocation9 + $0x80] sm:$0xff]
    %v239 = vld [vmem:[#allocation9 + $0x88] sm:$0xff]
    %v240 = vld [vmem:[#allocation9 + $0x90] sm:$0xff]
    %v241 = vld [vmem:[#allocation9 + $0x98] sm:$0xff]
    %v242 = vld [vmem:[#allocation9 + $0xa0] sm:$0xff]
    %v243 = vld [vmem:[#allocation9 + $0xa8] sm:$0xff]
    %v244 = vld [vmem:[#allocation9 + $0xb0] sm:$0xff]
    %v245 = vld [vmem:[#allocation9 + $0xb8] sm:$0xff]
    %v246 = vld [vmem:[#allocation9 + $0xc0] sm:$0xff]
    %v247 = vld [vmem:[#allocation9 + $0xc8] sm:$0xff]
    %v248 = vld [vmem:[#allocation9 + $0xd0] sm:$0xff]
    %v249 = vld [vmem:[#allocation9 + $0xd8] sm:$0xff]
    %v250 = vld [vmem:[#allocation9 + $0xe0] sm:$0xff]
    %v251 = vld [vmem:[#allocation9 + $0xe8] sm:$0xff]
    %v252 = vld [vmem:[#allocation9 + $0xf0] sm:$0xff]
    %v253 = vld [vmem:[#allocation9 + $0xf8] sm:$0xff]
    %v254 = vld [vmem:[#allocation9 + $0x100] sm:$0xff]
    %v255 = vld [vmem:[#allocation9 + $0x108] sm:$0xff]
    %v256 = vld [vmem:[#allocation9 + $0x110] sm:$0xff]
    %v257 = vld [vmem:[#allocation9 + $0x118] sm:$0xff]
    %v258 = vld [vmem:[#allocation9 + $0x120] sm:$0xff]
    %v259 = vld [vmem:[#allocation9 + $0x128] sm:$0xff]
    %v260 = vld [vmem:[#allocation9 + $0x130] sm:$0xff]
    %v261 = vld [vmem:[#allocation9 + $0x138] sm:$0xff]
    %v262 = vld [vmem:[#allocation9 + $0x140] sm:$0xff]
    %v263 = vld [vmem:[#allocation9 + $0x148] sm:$0xff]
    %v264 = vld [vmem:[#allocation9 + $0x150] sm:$0xff]
    %v265 = vld [vmem:[#allocation9 + $0x158] sm:$0xff]
    %v266 = vld [vmem:[#allocation9 + $0x160] sm:$0xff]
    %v267 = vld [vmem:[#allocation9 + $0x168] sm:$0xff]
    %v268 = vld [vmem:[#allocation9 + $0x170] sm:$0xff]
    %v269 = vld [vmem:[#allocation9 + $0x178] sm:$0xff]
    %v270 = vld [vmem:[#allocation9 + $0x180] sm:$0xff]
    %v271 = vld [vmem:[#allocation9 + $0x188] sm:$0xff]
    %v272 = vld [vmem:[#allocation9 + $0x190] sm:$0xff]
    %v273 = vld [vmem:[#allocation9 + $0x198] sm:$0xff]
    %v274 = vld [vmem:[#allocation9 + $0x1a0] sm:$0xff]
    %v275 = vld [vmem:[#allocation9 + $0x1a8] sm:$0xff]
    %v276 = vld [vmem:[#allocation9 + $0x1b0] sm:$0xff]
    %v277 = vld [vmem:[#allocation9 + $0x1b8] sm:$0xff]
    %v278 = vld [vmem:[#allocation9 + $0x1c0] sm:$0xff]
    %v279 = vld [vmem:[#allocation9 + $0x1c8] sm:$0xff]
    %v280 = vld [vmem:[#allocation9 + $0x1d0] sm:$0xff]
    %v281 = vld [vmem:[#allocation9 + $0x1d8] sm:$0xff]
    %v282 = vld [vmem:[#allocation9 + $0x1e0] sm:$0xff]
    %v283 = vld [vmem:[#allocation9 + $0x1e8] sm:$0xff]
    %v284 = vld [vmem:[#allocation9 + $0x1f0] sm:$0xff]
    %v285 = vld [vmem:[#allocation9 + $0x1f8] sm:$0xff]
    %v286 = vld [vmem:[%s5] sm:$0x3]
    %v288 = vperm.slane %v286, 0
    %v289 = vperm.slane %v286, 1
    %v356 = vunpack.c.l.b16 %v222
    %v357 = vunpack.c.h.b16 %v222
    %v358 = vunpack.c.l.b16 %v223
    %v359 = vunpack.c.h.b16 %v223
    %v360 = vunpack.c.l.b16 %v224
    %v361 = vunpack.c.h.b16 %v224
    %v362 = vunpack.c.l.b16 %v225
    %v363 = vunpack.c.h.b16 %v225
    %v364 = vunpack.c.l.b16 %v226
    %v365 = vunpack.c.h.b16 %v226
    %v366 = vunpack.c.l.b16 %v227
    %v367 = vunpack.c.h.b16 %v227
    %v368 = vunpack.c.l.b16 %v228
    %v369 = vunpack.c.h.b16 %v228
    %v370 = vunpack.c.l.b16 %v229
    %v371 = vunpack.c.h.b16 %v229
    %v372 = vunpack.c.l.b16 %v230
    %v373 = vunpack.c.h.b16 %v230
    %v374 = vunpack.c.l.b16 %v231
    %v375 = vunpack.c.h.b16 %v231
    %v376 = vunpack.c.l.b16 %v232
    %v377 = vunpack.c.h.b16 %v232
    %v378 = vunpack.c.l.b16 %v233
    %v379 = vunpack.c.h.b16 %v233
    %v380 = vunpack.c.l.b16 %v234
    %v381 = vunpack.c.h.b16 %v234
    %v382 = vunpack.c.l.b16 %v235
    %v383 = vunpack.c.h.b16 %v235
    %v384 = vunpack.c.l.b16 %v236
    %v385 = vunpack.c.h.b16 %v236
    %v386 = vunpack.c.l.b16 %v237
    %v387 = vunpack.c.h.b16 %v237
    %v388 = vunpack.c.l.b16 %v238
    %v389 = vunpack.c.h.b16 %v238
    %v390 = vunpack.c.l.b16 %v239
    %v391 = vunpack.c.h.b16 %v239
    %v392 = vunpack.c.l.b16 %v240
    %v393 = vunpack.c.h.b16 %v240
    %v394 = vunpack.c.l.b16 %v241
    %v395 = vunpack.c.h.b16 %v241
    %v396 = vunpack.c.l.b16 %v242
    %v397 = vunpack.c.h.b16 %v242
    %v398 = vunpack.c.l.b16 %v243
    %v399 = vunpack.c.h.b16 %v243
    %v400 = vunpack.c.l.b16 %v244
    %v401 = vunpack.c.h.b16 %v244
    %v402 = vunpack.c.l.b16 %v245
    %v403 = vunpack.c.h.b16 %v245
    %v404 = vunpack.c.l.b16 %v246
    %v405 = vunpack.c.h.b16 %v246
    %v406 = vunpack.c.l.b16 %v247
    %v407 = vunpack.c.h.b16 %v247
    %v408 = vunpack.c.l.b16 %v248
    %v409 = vunpack.c.h.b16 %v248
    %v410 = vunpack.c.l.b16 %v249
    %v411 = vunpack.c.h.b16 %v249
    %v412 = vunpack.c.l.b16 %v250
    %v413 = vunpack.c.h.b16 %v250
    %v414 = vunpack.c.l.b16 %v251
    %v415 = vunpack.c.h.b16 %v251
    %v416 = vunpack.c.l.b16 %v252
    %v417 = vunpack.c.h.b16 %v252
    %v418 = vunpack.c.l.b16 %v253
    %v419 = vunpack.c.h.b16 %v253
    %v420 = vunpack.c.l.b16 %v254
    %v421 = vunpack.c.h.b16 %v254
    %v422 = vunpack.c.l.b16 %v255
    %v423 = vunpack.c.h.b16 %v255
    %v424 = vunpack.c.l.b16 %v256
    %v425 = vunpack.c.h.b16 %v256
    %v426 = vunpack.c.l.b16 %v257
    %v427 = vunpack.c.h.b16 %v257
    %v428 = vunpack.c.l.b16 %v258
    %v429 = vunpack.c.h.b16 %v258
    %v430 = vunpack.c.l.b16 %v259
    %v431 = vunpack.c.h.b16 %v259
    %v432 = vunpack.c.l.b16 %v260
    %v433 = vunpack.c.h.b16 %v260
    %v434 = vunpack.c.l.b16 %v261
    %v435 = vunpack.c.h.b16 %v261
    %v436 = vunpack.c.l.b16 %v262
    %v437 = vunpack.c.h.b16 %v262
    %v438 = vunpack.c.l.b16 %v263
    %v439 = vunpack.c.h.b16 %v263
    %v440 = vunpack.c.l.b16 %v264
    %v441 = vunpack.c.h.b16 %v264
    %v442 = vunpack.c.l.b16 %v265
    %v443 = vunpack.c.h.b16 %v265
    %v444 = vunpack.c.l.b16 %v266
    %v445 = vunpack.c.h.b16 %v266
    %v446 = vunpack.c.l.b16 %v267
    %v447 = vunpack.c.h.b16 %v267
    %v448 = vunpack.c.l.b16 %v268
    %v449 = vunpack.c.h.b16 %v268
    %v450 = vunpack.c.l.b16 %v269
    %v451 = vunpack.c.h.b16 %v269
    %v452 = vunpack.c.l.b16 %v270
    %v453 = vunpack.c.h.b16 %v270
    %v454 = vunpack.c.l.b16 %v271
    %v455 = vunpack.c.h.b16 %v271
    %v456 = vunpack.c.l.b16 %v272
    %v457 = vunpack.c.h.b16 %v272
    %v458 = vunpack.c.l.b16 %v273
    %v459 = vunpack.c.h.b16 %v273
    %v460 = vunpack.c.l.b16 %v274
    %v461 = vunpack.c.h.b16 %v274
    %v462 = vunpack.c.l.b16 %v275
    %v463 = vunpack.c.h.b16 %v275
    %v464 = vunpack.c.l.b16 %v276
    %v465 = vunpack.c.h.b16 %v276
    %v466 = vunpack.c.l.b16 %v277
    %v467 = vunpack.c.h.b16 %v277
    %v468 = vunpack.c.l.b16 %v278
    %v469 = vunpack.c.h.b16 %v278
    %v470 = vunpack.c.l.b16 %v279
    %v471 = vunpack.c.h.b16 %v279
    %v472 = vunpack.c.l.b16 %v280
    %v473 = vunpack.c.h.b16 %v280
    %v474 = vunpack.c.l.b16 %v281
    %v475 = vunpack.c.h.b16 %v281
    %v476 = vunpack.c.l.b16 %v282
    %v477 = vunpack.c.h.b16 %v282
    %v478 = vunpack.c.l.b16 %v283
    %v479 = vunpack.c.h.b16 %v283
    %v480 = vunpack.c.l.b16 %v284
    %v481 = vunpack.c.h.b16 %v284
    %v482 = vunpack.c.l.b16 %v285
    %v483 = vunpack.c.h.b16 %v285
    %v484 = vpack.c.b16 %v358, %v356
    %v485 = vpack.c.b16 %v359, %v357
    %v486 = vpack.c.b16 %v362, %v360
    %v487 = vpack.c.b16 %v363, %v361
    %v488 = vpack.c.b16 %v366, %v364
    %v489 = vpack.c.b16 %v367, %v365
    %v490 = vpack.c.b16 %v370, %v368
    %v491 = vpack.c.b16 %v371, %v369
    %v492 = vpack.c.b16 %v374, %v372
    %v493 = vpack.c.b16 %v375, %v373
    %v494 = vpack.c.b16 %v378, %v376
    %v495 = vpack.c.b16 %v379, %v377
    %v496 = vpack.c.b16 %v382, %v380
    %v497 = vpack.c.b16 %v383, %v381
    %v498 = vpack.c.b16 %v386, %v384
    %v499 = vpack.c.b16 %v387, %v385
    %v500 = vpack.c.b16 %v390, %v388
    %v501 = vpack.c.b16 %v391, %v389
    %v502 = vpack.c.b16 %v394, %v392
    %v503 = vpack.c.b16 %v395, %v393
    %v504 = vpack.c.b16 %v398, %v396
    %v505 = vpack.c.b16 %v399, %v397
    %v506 = vpack.c.b16 %v402, %v400
    %v507 = vpack.c.b16 %v403, %v401
    %v508 = vpack.c.b16 %v406, %v404
    %v509 = vpack.c.b16 %v407, %v405
    %v510 = vpack.c.b16 %v410, %v408
    %v511 = vpack.c.b16 %v411, %v409
    %v512 = vpack.c.b16 %v414, %v412
    %v513 = vpack.c.b16 %v415, %v413
    %v514 = vpack.c.b16 %v418, %v416
    %v515 = vpack.c.b16 %v419, %v417
    %v516 = vpack.c.b16 %v422, %v420
    %v517 = vpack.c.b16 %v423, %v421
    %v518 = vpack.c.b16 %v426, %v424
    %v519 = vpack.c.b16 %v427, %v425
    %v520 = vpack.c.b16 %v430, %v428
    %v521 = vpack.c.b16 %v431, %v429
    %v522 = vpack.c.b16 %v434, %v432
    %v523 = vpack.c.b16 %v435, %v433
    %v524 = vpack.c.b16 %v438, %v436
    %v525 = vpack.c.b16 %v439, %v437
    %v526 = vpack.c.b16 %v442, %v440
    %v527 = vpack.c.b16 %v443, %v441
    %v528 = vpack.c.b16 %v446, %v444
    %v529 = vpack.c.b16 %v447, %v445
    %v530 = vpack.c.b16 %v450, %v448
    %v531 = vpack.c.b16 %v451, %v449
    %v532 = vpack.c.b16 %v454, %v452
    %v533 = vpack.c.b16 %v455, %v453
    %v534 = vpack.c.b16 %v458, %v456
    %v535 = vpack.c.b16 %v459, %v457
    %v536 = vpack.c.b16 %v462, %v460
    %v537 = vpack.c.b16 %v463, %v461
    %v538 = vpack.c.b16 %v466, %v464
    %v539 = vpack.c.b16 %v467, %v465
    %v540 = vpack.c.b16 %v470, %v468
    %v541 = vpack.c.b16 %v471, %v469
    %v542 = vpack.c.b16 %v474, %v472
    %v543 = vpack.c.b16 %v475, %v473
    %v544 = vpack.c.b16 %v478, %v476
    %v545 = vpack.c.b16 %v479, %v477
    %v546 = vpack.c.b16 %v482, %v480
    %v547 = vpack.c.b16 %v483, %v481
    %612 = vmatpush.bf16.msra.mxu0 %v498
    %613 = vmatpush.bf16.msra.mxu0 %v496
    %614 = vmatpush.bf16.msra.mxu0 %v494
    %615 = vmatpush.bf16.msra.mxu0 %v492
    %616 = vmatpush.bf16.msra.mxu0 %v490
    %617 = vmatpush.bf16.msra.mxu0 %v488
    %618 = vmatpush.bf16.msra.mxu0 %v486
    %619 = vmatpush.bf16.msra.mxu0 %v484
    %620 = vmatmul.bf16.gmra.mxu0 %v218
    %v621 = vpop.f32.mrf.mxu0
    %v622 = vadd.f32 %v288, %v621
    %v623 = vpop.f32.mrf.mxu0
    %624 = vdwg.mxu0
    %625 = vmatpush.bf16.msra.mxu0 %v514
    %626 = vmatpush.bf16.msra.mxu0 %v512
    %627 = vmatpush.bf16.msra.mxu0 %v510
    %628 = vmatpush.bf16.msra.mxu0 %v508
    %629 = vmatpush.bf16.msra.mxu0 %v506
    %630 = vmatpush.bf16.msra.mxu0 %v504
    %631 = vmatpush.bf16.msra.mxu0 %v502
    %632 = vmatpush.bf16.msra.mxu0 %v500
    %633 = vmatmul.bf16.gmra.mxu0 %v219
    %v634 = vpop.f32.mrf.mxu0
    %v635 = vadd.f32 %v622, %v634
    %v636 = vpop.f32.mrf.mxu0
    %637 = vdwg.mxu0
    %638 = vmatpush.bf16.msra.mxu0 %v530
    %639 = vmatpush.bf16.msra.mxu0 %v528
    %640 = vmatpush.bf16.msra.mxu0 %v526
    %641 = vmatpush.bf16.msra.mxu0 %v524
    %642 = vmatpush.bf16.msra.mxu0 %v522
    %643 = vmatpush.bf16.msra.mxu0 %v520
    %644 = vmatpush.bf16.msra.mxu0 %v518
    %645 = vmatpush.bf16.msra.mxu0 %v516
    %646 = vmatmul.bf16.gmra.mxu0 %v220
    %v647 = vpop.f32.mrf.mxu0
    %v648 = vadd.f32 %v635, %v647
    %v649 = vpop.f32.mrf.mxu0
    %650 = vdwg.mxu0
    %651 = vmatpush.bf16.msra.mxu0 %v546
    %652 = vmatpush.bf16.msra.mxu0 %v544
    %653 = vmatpush.bf16.msra.mxu0 %v542
    %654 = vmatpush.bf16.msra.mxu0 %v540
    %655 = vmatpush.bf16.msra.mxu0 %v538
    %656 = vmatpush.bf16.msra.mxu0 %v536
    %657 = vmatpush.bf16.msra.mxu0 %v534
    %658 = vmatpush.bf16.msra.mxu0 %v532
    %659 = vmatmul.bf16.gmra.mxu0 %v221
    %v660 = vpop.f32.mrf.mxu0
    %v661 = vadd.f32 %v648, %v660
    %v662 = vpop.f32.mrf.mxu0
    %663 = vdwg.mxu0
    %664 = vmatpush.bf16.msra.mxu0 %v499
    %665 = vmatpush.bf16.msra.mxu0 %v497
    %666 = vmatpush.bf16.msra.mxu0 %v495
    %667 = vmatpush.bf16.msra.mxu0 %v493
    %668 = vmatpush.bf16.msra.mxu0 %v491
    %669 = vmatpush.bf16.msra.mxu0 %v489
    %670 = vmatpush.bf16.msra.mxu0 %v487
    %671 = vmatpush.bf16.msra.mxu0 %v485
    %672 = vmatmul.bf16.gmra.mxu0 %v218
    %v673 = vpop.f32.mrf.mxu0
    %v674 = vadd.f32 %v289, %v673
    %v675 = vpop.f32.mrf.mxu0
    %676 = vdwg.mxu0
    %677 = vmatpush.bf16.msra.mxu0 %v515
    %678 = vmatpush.bf16.msra.mxu0 %v513
    %679 = vmatpush.bf16.msra.mxu0 %v511
    %680 = vmatpush.bf16.msra.mxu0 %v509
    %681 = vmatpush.bf16.msra.mxu0 %v507
    %682 = vmatpush.bf16.msra.mxu0 %v505
    %683 = vmatpush.bf16.msra.mxu0 %v503
    %684 = vmatpush.bf16.msra.mxu0 %v501
    %685 = vmatmul.bf16.gmra.mxu0 %v219
    %v686 = vpop.f32.mrf.mxu0
    %v687 = vadd.f32 %v674, %v686
    %v688 = vpop.f32.mrf.mxu0
    %689 = vdwg.mxu0
    %690 = vmatpush.bf16.msra.mxu0 %v531
    %691 = vmatpush.bf16.msra.mxu0 %v529
    %692 = vmatpush.bf16.msra.mxu0 %v527
    %693 = vmatpush.bf16.msra.mxu0 %v525
    %694 = vmatpush.bf16.msra.mxu0 %v523
    %695 = vmatpush.bf16.msra.mxu0 %v521
    %696 = vmatpush.bf16.msra.mxu0 %v519
    %697 = vmatpush.bf16.msra.mxu0 %v517
    %698 = vmatmul.bf16.gmra.mxu0 %v220
    %v699 = vpop.f32.mrf.mxu0
    %v700 = vadd.f32 %v687, %v699
    %v701 = vpop.f32.mrf.mxu0
    %702 = vdwg.mxu0
    %703 = vmatpush.bf16.msra.mxu0 %v547
    %704 = vmatpush.bf16.msra.mxu0 %v545
    %705 = vmatpush.bf16.msra.mxu0 %v543
    %706 = vmatpush.bf16.msra.mxu0 %v541
    %707 = vmatpush.bf16.msra.mxu0 %v539
    %708 = vmatpush.bf16.msra.mxu0 %v537
    %709 = vmatpush.bf16.msra.mxu0 %v535
    %710 = vmatpush.bf16.msra.mxu0 %v533
    %711 = vmatmul.bf16.gmra.mxu0 %v221
    %v712 = vpop.f32.mrf.mxu0
    %v713 = vadd.f32 %v700, %v712
    %v714 = vpop.f32.mrf.mxu0
    %715 = vdwg.mxu0
    %v716 = vmax.f32 %v661, 0.0
    %v717 = vmax.f32 %v713, 0.0
    %v718 = vld [vmem:[#allocation11] sm:$0x3]
    %v720 = vperm.slane %v718, 0
    %v721 = vperm.slane %v718, 1
    %v724 = vmul.f32 %v716, %v720
    %v725 = vmul.f32 %v717, %v721
    %v726 = vadd.f32 %v724, %v725
    %727 = vadd.xlane.f32.xlu0 %v726
    %v728 = vpop.xlane.xlu0 %727
    %s729 = sld [smem:[#allocation2]]
    %v730 = vstv %s729
    %v731 = vadd.f32 %v728, %v730
    %v733 = vlaneseq
    %v734 = vand.u32 %v733, 127
    %v735 = vperm.slane %v731, %v734
    %vm737 = vcmask 57344
    %738 = vst.msk [vmem:[#allocation12] sm:$0x1] %vm737, %v735
    // Predicated region
    $region54: #{tpu_custom_call.1} parent=1 // pred_check
      _
    $region55: #{tpu_custom_call.1} parent=1 // pred_check_branch
      %740 = sbr.rel (0) target = $region57
    $region56: #{tpu_custom_call.1} parent=1 // pred_region
      %742 = vsyncadd [#allocation5], 0
      %s744 = sshll.u32 [#allocation12], 4
      %s745 = int_to_ptr.vmem [resolvable:$true] %s744
      %s746 = sshll.u32 %s8, 4
      %s747 = int_to_ptr.hbm [resolvable:$true] %s746
      %749 = dma.vmem_to_hbm [thread:$0]  %s745, 16, %s747, [#allocation5]
    $region57: #{tpu_custom_call.1} parent=1 // pred_fallthru
      _
    // Predicated region
    $region58: #{tpu_custom_call.1} parent=1 // pred_check
      _
    $region59: #{tpu_custom_call.1} parent=1 // pred_check_branch
      %751 = sbr.rel (0) target = $region61
    $region60: #{tpu_custom_call.1} parent=1 // pred_region
      %753 = dma.done [#allocation5], 16
    $region61: #{tpu_custom_call.1} parent=1 // pred_fallthru
      _
    %754 = vsyncpa [#allocation4], 1
    %755 = vsyncpa [#allocation7], 1
    %756 = vsyncpa [#allocation10], 1
    %757 = vsyncpa [#allocation5], 1

</llo_original>
